<compile_context>
chip_gen: v6e
topology: v6e:2x2x1
jax: 0.10.0
libtpu: 0.0.40
codegen_flags: <defaults>
</compile_context>

<pallas_src>
import functools

import jax
import jax.numpy as jnp
from jax import lax
from jax.experimental import pallas as pl
from jax.experimental.pallas import tpu as pltpu


_VMEM_LIMIT_BYTES = 48 * 1024 * 1024   # fits v5e/v6e (128 MiB) and v7x (64 MiB) physical VMEM


def _round_up(n, m):
    return ((n + m - 1) // m) * m


# ----------------------------------------------------------------------------
# Kernels
# ----------------------------------------------------------------------------
def _input_proj_kernel(x_ref, w_ref, b_ref, out_ref):
    """Batched input projection: (rows_chunk, D) @ (D, 4Hp) + (1, 4Hp)."""
    out_ref[...] = (
        jnp.dot(x_ref[...], w_ref[...], preferred_element_type=jnp.float32)
        + b_ref[...]
    ).astype(out_ref.dtype)


def _lstm_gate_step(g, c_prev, hp):
    """Gate nonlinearities + state update. g: (Bp, 4Hp), c_prev: (Bp, Hp).

    Gate order (i, f, g, o) matches PyTorch; each gate occupies a lane-aligned Hp slice.
    """
    i_g = jax.nn.sigmoid(g[:, 0 * hp:1 * hp])
    f_g = jax.nn.sigmoid(g[:, 1 * hp:2 * hp])
    g_g = jnp.tanh(g[:, 2 * hp:3 * hp])
    o_g = jax.nn.sigmoid(g[:, 3 * hp:4 * hp])
    c_new = f_g * c_prev + i_g * g_g
    h_new = o_g * jnp.tanh(c_new)
    return h_new, c_new


def _lstm_chunk_kernel(g_ref, whh_ref, out_ref, h_scr, c_scr, *, hp, t_chunk, unroll):
    """One chunk of the recurrence; outputs hidden states.

    g_ref:   (T_chunk, Bp, 4Hp) precomputed x-projection (+ combined bias)
    whh_ref: (Hp, 4Hp)          hidden->gates weights (transposed, gate-padded)
    out_ref: (T_chunk, Bp, Hp)
    h_scr, c_scr: (Bp, Hp)      state carried across grid steps (VMEM scratch)
    """
    @pl.when(pl.program_id(0) == 0)
    def _():
        h_scr[...] = jnp.zeros_like(h_scr)
        c_scr[...] = jnp.zeros_like(c_scr)

    whh = whh_ref[...]

    def step(t, carry):
        h, c = carry
        g = g_ref[t] + jnp.dot(h, whh, preferred_element_type=jnp.float32)
        h, c = _lstm_gate_step(g, c, hp)
        out_ref[t] = h.astype(out_ref.dtype)
        return h, c

    h, c = lax.fori_loop(0, t_chunk, step, (h_scr[...], c_scr[...]), unroll=unroll)
    h_scr[...] = h
    c_scr[...] = c


def _lstm_chunk_fc_kernel(g_ref, whh_ref, wfc_ref, bfc_ref, out_ref, h_scr, c_scr,
                          *, hp, t_chunk, unroll):
    """Last layer: recurrence with the Linear head fused into the per-step epilogue."""
    @pl.when(pl.program_id(0) == 0)
    def _():
        h_scr[...] = jnp.zeros_like(h_scr)
        c_scr[...] = jnp.zeros_like(c_scr)

    whh = whh_ref[...]
    wfc = wfc_ref[...]
    bfc = bfc_ref[...]

    def step(t, carry):
        h, c = carry
        g = g_ref[t] + jnp.dot(h, whh, preferred_element_type=jnp.float32)
        h, c = _lstm_gate_step(g, c, hp)
        out_ref[t] = (
            jnp.dot(h, wfc, preferred_element_type=jnp.float32) + bfc
        ).astype(out_ref.dtype)
        return h, c

    h, c = lax.fori_loop(0, t_chunk, step, (h_scr[...], c_scr[...]), unroll=unroll)
    h_scr[...] = h
    c_scr[...] = c


# ----------------------------------------------------------------------------
# Pallas wrappers
# ----------------------------------------------------------------------------
def _input_projection(x_tbd, wih_t, bias, *, t_chunk):
    """All-timestep input projection: (T_pad, Bp, D) -> (T_pad, Bp, 4Hp)."""
    t_pad, bp, d_in = x_tbd.shape
    g4 = wih_t.shape[1]
    rows = t_pad * bp
    rows_chunk = t_chunk * bp
    x2 = x_tbd.reshape(rows, d_in)          # leading-dim merge: layout-free in XLA

    out2 = pl.pallas_call(
        _input_proj_kernel,
        out_shape=jax.ShapeDtypeStruct((rows, g4), jnp.float32),
        grid_spec=pltpu.PrefetchScalarGridSpec(
            num_scalar_prefetch=0,
            grid=(rows // rows_chunk,),
            in_specs=[
                pl.BlockSpec((rows_chunk, d_in), lambda c: (c, 0)),
                pl.BlockSpec((d_in, g4), lambda c: (0, 0)),
                pl.BlockSpec((1, g4), lambda c: (0, 0)),
            ],
            out_specs=pl.BlockSpec((rows_chunk, g4), lambda c: (c, 0)),
        ),
        compiler_params=pltpu.CompilerParams(
            dimension_semantics=("parallel",),
            vmem_limit_bytes=_VMEM_LIMIT_BYTES,
        ),
    )(x2, wih_t, bias)
    return out2.reshape(t_pad, bp, g4)


def _lstm_recurrence(gates, whh_t, *, hp, t_chunk, fc=None):
    """Sequential recurrence over time-major precomputed gates.

    gates: (T_pad, Bp, 4Hp). If fc=(wfc_t, bfc) is given, the FC head is fused and the
    output is (T_pad, Bp, Cp) logits; otherwise (T_pad, Bp, Hp) hidden states.
    """
    t_pad, bp, g4 = gates.shape
    n_chunks = t_pad // t_chunk
    unroll = t_chunk <= 32            # fully unroll short fixed inner loops

    gate_spec = pl.BlockSpec((t_chunk, bp, g4), lambda c: (c, 0, 0))
    whh_spec = pl.BlockSpec((hp, g4), lambda c: (0, 0))
    scratch = [pltpu.VMEM((bp, hp), jnp.float32),   # h state
               pltpu.VMEM((bp, hp), jnp.float32)]   # c state
    cparams = pltpu.CompilerParams(
        dimension_semantics=("arbitrary",),         # time recurrence is sequential
        vmem_limit_bytes=_VMEM_LIMIT_BYTES,
    )

    if fc is None:
        kernel = functools.partial(_lstm_chunk_kernel, hp=hp, t_chunk=t_chunk, unroll=unroll)
        out_dim = hp
        in_specs = [gate_spec, whh_spec]
        args = (gates, whh_t)
    else:
        wfc_t, bfc = fc
        cp = wfc_t.shape[1]
        kernel = functools.partial(_lstm_chunk_fc_kernel, hp=hp, t_chunk=t_chunk, unroll=unroll)
        out_dim = cp
        in_specs = [gate_spec, whh_spec,
                    pl.BlockSpec((hp, cp), lambda c: (0, 0)),
                    pl.BlockSpec((1, cp), lambda c: (0, 0))]
        args = (gates, whh_t, wfc_t, bfc)

    return pl.pallas_call(
        kernel,
        out_shape=jax.ShapeDtypeStruct((t_pad, bp, out_dim), jnp.float32),
        grid_spec=pltpu.PrefetchScalarGridSpec(
            num_scalar_prefetch=0,
            grid=(n_chunks,),
            in_specs=in_specs,
            out_specs=pl.BlockSpec((t_chunk, bp, out_dim), lambda c: (c, 0, 0)),
            scratch_shapes=scratch,
        ),
        compiler_params=cparams,
    )(*args)


# ----------------------------------------------------------------------------
# Weight layout / padding helpers (zero padding keeps padded lanes exactly 0)
# ----------------------------------------------------------------------------
def _pad_lstm_weights(w_ih, w_hh, b_ih, b_hh, h, hp, in_width):
    """Transpose to (in, 4H) layout; pad each gate block to Hp lanes and the input
    contraction dim to `in_width` (the padded width of this layer's input)."""
    def pad_gates(a):                                  # (..., 4H) -> (..., 4Hp)
        parts = jnp.split(a, 4, axis=-1)
        widths = [(0, 0)] * (a.ndim - 1) + [(0, hp - h)]
        return jnp.concatenate([jnp.pad(p, widths) for p in parts], axis=-1)

    d_in = w_ih.shape[1]
    wih_t = pad_gates(jnp.transpose(w_ih).astype(jnp.float32))            # (d_in, 4Hp)
    wih_t = jnp.pad(wih_t, ((0, in_width - d_in), (0, 0)))                # (in_width, 4Hp)
    whh_t = pad_gates(jnp.transpose(w_hh).astype(jnp.float32))            # (H, 4Hp)
    whh_t = jnp.pad(whh_t, ((0, hp - h), (0, 0)))                         # (Hp, 4Hp)
    bias = pad_gates((b_ih + b_hh).astype(jnp.float32).reshape(1, -1))    # (1, 4Hp)
    return wih_t, whh_t, bias


def _pad_fc_weights(w_fc, b_fc, h, hp, c, cp):
    wfc_t = jnp.pad(jnp.transpose(w_fc).astype(jnp.float32),
                    ((0, hp - h), (0, cp - c)))                           # (Hp, Cp)
    bfc = jnp.pad(b_fc.astype(jnp.float32).reshape(1, -1), ((0, 0), (0, cp - c)))
    return wfc_t, bfc


# ----------------------------------------------------------------------------
# Full forward pass (matches BiLSTM.forward: LSTM(batch_first) -> Linear -> view(-1, C))
# ----------------------------------------------------------------------------
def bilstm_forward(x_btd, params, hidden_size, num_classes, num_layers, *, t_chunk_max=64):
    B, T, _ = x_btd.shape
    H, C = hidden_size, num_classes
    bp = _round_up(B, 8)          # sublane alignment
    hp = _round_up(H, 128)        # lane alignment per gate
    cp = _round_up(C, 128)        # lane-dense logits output
    t_chunk = min(_round_up(T, 8), _round_up(t_chunk_max, 8))
    t_pad = _round_up(T, t_chunk)

    # Single small relayout of the raw input to time-major, plus B/T padding, done once.
    h = jnp.pad(jnp.transpose(x_btd.astype(jnp.float32), (1, 0, 2)),
                ((0, t_pad - T), (0, bp - B), (0, 0)))                    # (T_pad, Bp, D_in)

    logits_pad = None
    for layer in range(num_layers):
        w_ih, w_hh, b_ih, b_hh = params["lstm"][layer]
        wih_t, whh_t, bias = _pad_lstm_weights(w_ih, w_hh, b_ih, b_hh, H, hp, h.shape[-1])
        gates = _input_projection(h, wih_t, bias, t_chunk=t_chunk)        # (T_pad, Bp, 4Hp)
        if layer == num_layers - 1:
            fc = _pad_fc_weights(params["fc_w"], params["fc_b"], H, hp, C, cp)
            logits_pad = _lstm_recurrence(gates, whh_t, hp=hp, t_chunk=t_chunk, fc=fc)
        else:
            h = _lstm_recurrence(gates, whh_t, hp=hp, t_chunk=t_chunk)    # (T_pad, Bp, Hp)

    logits = logits_pad[:T, :B, :C]                                       # (T, B, C)
    return jnp.transpose(logits, (1, 0, 2)).reshape(B * T, C)             # == view(-1, C)


# ----------------------------------------------------------------------------
# Parameter init (PyTorch-style uniform(-1/sqrt(H), 1/sqrt(H))) and pure-JAX reference
# ----------------------------------------------------------------------------
def init_params(key, input_size, hidden_size, num_classes, num_layers):
    params = {"lstm": []}
    bound = 1.0 / jnp.sqrt(jnp.float32(hidden_size))
    for layer in range(num_layers):
        d_in = input_size if layer == 0 else hidden_size
        key, k1, k2, k3, k4 = jax.random.split(key, 5)
        w_ih = jax.random.uniform(k1, (4 * hidden_size, d_in), jnp.float32, -bound, bound)
        w_hh = jax.random.uniform(k2, (4 * hidden_size, hidden_size), jnp.float32, -bound, bound)
        b_ih = jax.random.uniform(k3, (4 * hidden_size,), jnp.float32, -bound, bound)
        b_hh = jax.random.uniform(k4, (4 * hidden_size,), jnp.float32, -bound, bound)
        params["lstm"].append((w_ih, w_hh, b_ih, b_hh))
    key, k5, k6 = jax.random.split(key, 3)
    params["fc_w"] = jax.random.uniform(k5, (num_classes, hidden_size), jnp.float32, -bound, bound)
    params["fc_b"] = jax.random.uniform(k6, (num_classes,), jnp.float32, -bound, bound)
    return params


def _reference_forward(x_btd, params, hidden_size, num_classes, num_layers):
    """Plain-JAX LSTM + Linear, used as a numerical check of the Pallas path."""
    B, T, _ = x_btd.shape
    H = hidden_size
    h_seq = x_btd.astype(jnp.float32)
    for layer in range(num_layers):
        w_ih, w_hh, b_ih, b_hh = params["lstm"][layer]
        h = jnp.zeros((B, H), jnp.float32)
        c = jnp.zeros((B, H), jnp.float32)
        outs = []
        for t in range(T):
            g = h_seq[:, t, :] @ w_ih.T + h @ w_hh.T + b_ih + b_hh
            i = jax.nn.sigmoid(g[:, :H])
            f = jax.nn.sigmoid(g[:, H:2 * H])
            gg = jnp.tanh(g[:, 2 * H:3 * H])
            o = jax.nn.sigmoid(g[:, 3 * H:])
            c = f * c + i * gg
            h = o * jnp.tanh(c)
            outs.append(h)
        h_seq = jnp.stack(outs, axis=1)                    # (B, T, H)
    logits = h_seq @ params["fc_w"].T + params["fc_b"]
    return logits.reshape(-1, num_classes)


if __name__ == "__main__":
    batch, seq = 2, 8
    input_size, hidden_size, num_classes, num_layers = 16, 32, 5, 2

    key = jax.random.PRNGKey(0)
    key, kx = jax.random.split(key)
    x = jax.random.normal(kx, (batch, seq, input_size), dtype=jnp.float32)
    params = init_params(key, input_size, hidden_size, num_classes, num_layers)

    out = bilstm_forward(x, params, hidden_size, num_classes, num_layers)
    out = jax.block_until_ready(out)

    assert out.shape == (batch * seq, num_classes), out.shape
    assert out.dtype == jnp.float32

    ref = _reference_forward(x, params, hidden_size, num_classes, num_layers)
    max_err = float(jnp.max(jnp.abs(out - ref)))
    assert bool(jnp.allclose(out, ref, rtol=1e-3, atol=1e-3)), max_err

    print("KERNEL_OK")
</pallas_src>

<mosaic_0001>
module attributes {stable_mosaic.version = 11 : i64} {
  func.func @_input_proj_kernel(%arg0: i32, %arg1: memref<64x16xf32, #tpu.memory_space<vmem>>, %arg2: memref<16x512xf32, #tpu.memory_space<vmem>>, %arg3: memref<1x512xf32, #tpu.memory_space<vmem>>, %arg4: memref<64x512xf32, #tpu.memory_space<vmem>>) attributes {dimension_semantics = [#tpu.dimension_semantics<parallel>], iteration_bounds = array<i64: 1>, scalar_prefetch = 0 : i64, scratch_operands = 0 : i64, tpu.core_type = #tpu.core_type<tc>, window_params = [{transform_indices = @transform_0, window_bounds = array<i64: 64, 16>}, {pipeline_mode = #tpu.pipeline_mode<synchronous>, transform_indices = @transform_1, window_bounds = array<i64: 16, 512>}, {pipeline_mode = #tpu.pipeline_mode<synchronous>, transform_indices = @transform_2, window_bounds = array<i64: 1, 512>}, {transform_indices = @transform_3, window_bounds = array<i64: 64, 512>}]} {
    %c0 = arith.constant 0 : index
    %c0_0 = arith.constant 0 : index
    %0 = vector.load %arg1[%c0, %c0_0] : memref<64x16xf32, #tpu.memory_space<vmem>>, vector<64x16xf32>
    %c0_1 = arith.constant 0 : index
    %c0_2 = arith.constant 0 : index
    %1 = vector.load %arg2[%c0_1, %c0_2] : memref<16x512xf32, #tpu.memory_space<vmem>>, vector<16x512xf32>
    %cst = arith.constant dense<0.000000e+00> : vector<64x512xf32>
    %2 = tpu.matmul %0, %1, %cst {dimension_numbers = #tpu.dot_dimension_numbers<[1], [0], [0], [1], [0, 0, 1, 1], [], []>} : vector<64x16xf32>, vector<16x512xf32>, vector<64x512xf32> -> vector<64x512xf32>
    %c0_3 = arith.constant 0 : index
    %c0_4 = arith.constant 0 : index
    %3 = vector.load %arg3[%c0_3, %c0_4] : memref<1x512xf32, #tpu.memory_space<vmem>>, vector<1x512xf32>
    %4 = vector.broadcast %3 : vector<1x512xf32> to vector<64x512xf32>
    %5 = arith.addf %2, %4 : vector<64x512xf32>
    %c0_5 = arith.constant 0 : index
    %c0_6 = arith.constant 0 : index
    %6 = vector.load %arg4[%c0_5, %c0_6] : memref<64x512xf32, #tpu.memory_space<vmem>>, vector<64x512xf32>
    tpu.vector_store %arg4[%c0_5, %c0_6], %5 {strides = array<i32>} : memref<64x512xf32, #tpu.memory_space<vmem>>, vector<64x512xf32>,
    return
  }
  func.func @transform_0(%arg0: i32) -> (i32, i32) {
    %c0_i32 = arith.constant 0 : i32
    %c0_i32_0 = arith.constant 0 : i32
    return %arg0, %c0_i32 : i32, i32
  }
  func.func @transform_1(%arg0: i32) -> (i32, i32) {
    %c0_i32 = arith.constant 0 : i32
    %c0_i32_0 = arith.constant 0 : i32
    %c0_i32_1 = arith.constant 0 : i32
    return %c0_i32, %c0_i32_0 : i32, i32
  }
  func.func @transform_2(%arg0: i32) -> (i32, i32) {
    %c0_i32 = arith.constant 0 : i32
    %c0_i32_0 = arith.constant 0 : i32
    %c0_i32_1 = arith.constant 0 : i32
    return %c0_i32, %c0_i32_0 : i32, i32
  }
  func.func @transform_3(%arg0: i32) -> (i32, i32) {
    %c0_i32 = arith.constant 0 : i32
    %c0_i32_0 = arith.constant 0 : i32
    return %arg0, %c0_i32 : i32, i32
  }
}

</mosaic_0001>

<llo_original>
// kernel: tpu_custom_call.1
$region0: #{tpu_custom_call.1}
  #allocation0 [shape = 'u32[]', space=smem, size = 0x4, offset = 0x4, fixed_abs, tag = 'smem constant byte address 0x4 - core index']
  #allocation1 [shape = 'u32[144,128]{1,0:T(1,128)}', space=vmem, size = 0x12000, scoped, tag = 'internal scratch']
  %s0 = inlined_call_operand.vmem [shape: f32[64,16], index: 0, kind: input, shape index: {}]
  %s1 = inlined_call_operand.vmem [shape: f32[16,512], index: 1, kind: input, shape index: {}]
  %s2 = inlined_call_operand.vmem [shape: f32[1,512], index: 2, kind: input, shape index: {}]
  %s3 = inlined_call_operand.hbm [shape: f32[64,512], index: 3, kind: output, shape index: {}]
  %s4 = sld [smem:[#allocation0]]
  $region22: #{tpu_custom_call.1} parent=0
    _
  %s6 = ssub.s32 1, %s4
  %s7 = scalar_select 0, %s6, %s4
  $region1: #{tpu_custom_call.1} parent=0
    #allocation2 [shape = 'u8[131072]{0}', space=vmem, size = 0x20000, scoped, tag = 'output window, operand 0, single buffered']
    #allocation3 [shape = 's32[1]{0}', space=sflag, size = 0x4, scoped, tag = 'scoped memory for tpu_custom_call.1']
    %8 = vsyncpa [#allocation3], 0
    // Predicated region
    $region2: #{tpu_custom_call.1} parent=1 // pred_check
      _
    $region3: #{tpu_custom_call.1} parent=1 // pred_check_branch
      %10 = sbr.rel (0) target = $region5
    $region4: #{tpu_custom_call.1} parent=1 // pred_region
      _
    $region5: #{tpu_custom_call.1} parent=1 // pred_fallthru
      _
    // Predicated region
    $region6: #{tpu_custom_call.1} parent=1 // pred_check
      _
    $region7: #{tpu_custom_call.1} parent=1 // pred_check_branch
      %12 = sbr.rel (0) target = $region9
    $region8: #{tpu_custom_call.1} parent=1 // pred_region
      _
    $region9: #{tpu_custom_call.1} parent=1 // pred_fallthru
      _
    // Predicated region
    $region10: #{tpu_custom_call.1} parent=1 // pred_check
      _
    $region11: #{tpu_custom_call.1} parent=1 // pred_check_branch
      %14 = sbr.rel (0) target = $region13
    $region12: #{tpu_custom_call.1} parent=1 // pred_region
      _
    $region13: #{tpu_custom_call.1} parent=1 // pred_fallthru
      _
    %v15 = vld [vmem:[%s0] sm:$0xff]
    %v16 = vld [vmem:[%s0 + $0x8] sm:$0xff]
    %v17 = vld [vmem:[%s0 + $0x10] sm:$0xff]
    %v18 = vld [vmem:[%s0 + $0x18] sm:$0xff]
    %v19 = vld [vmem:[%s0 + $0x20] sm:$0xff]
    %v20 = vld [vmem:[%s0 + $0x28] sm:$0xff]
    %v21 = vld [vmem:[%s0 + $0x30] sm:$0xff]
    %v22 = vld [vmem:[%s0 + $0x38] sm:$0xff]
    %v23 = vld [vmem:[%s1] sm:$0xff]
    %v24 = vld [vmem:[%s1 + $0x8] sm:$0xff]
    %v25 = vld [vmem:[%s1 + $0x10] sm:$0xff]
    %v26 = vld [vmem:[%s1 + $0x18] sm:$0xff]
    %v27 = vld [vmem:[%s1 + $0x20] sm:$0xff]
    %v28 = vld [vmem:[%s1 + $0x28] sm:$0xff]
    %v29 = vld [vmem:[%s1 + $0x30] sm:$0xff]
    %v30 = vld [vmem:[%s1 + $0x38] sm:$0xff]
    %v31 = vld [vmem:[%s2] sm:$0xf]
    %v33 = vlaneseq
    %v34 = vshrl.u32 %v33, 7
    %v35 = vsub.s32 0, %v34
    %v36 = vrot.slane %v31, %v35
    %v37 = vlaneseq
    %v38 = vshrl.u32 %v37, 7
    %v39 = vsub.s32 1, %v38
    %v40 = vrot.slane %v31, %v39
    %v41 = vlaneseq
    %v42 = vshrl.u32 %v41, 7
    %v43 = vsub.s32 2, %v42
    %v44 = vrot.slane %v31, %v43
    %v45 = vlaneseq
    %v46 = vshrl.u32 %v45, 7
    %v47 = vsub.s32 3, %v46
    %v48 = vrot.slane %v31, %v47
    %vm53 = vcmask 130048
    %v55 = vsel %vm53, %v15, 0
    %v58 = vsel %vm53, %v16, 0
    %v61 = vsel %vm53, %v17, 0
    %v64 = vsel %vm53, %v18, 0
    %v67 = vsel %vm53, %v19, 0
    %v70 = vsel %vm53, %v20, 0
    %v73 = vsel %vm53, %v21, 0
    %v76 = vsel %vm53, %v22, 0
    %78 = vmatprep.subr.mxu0 0.0
    %79 = vmatpush1.msra.mxu0 0.0
    %80 = vmatprep.subr.mxu0 0.0
    %81 = vmatpush1.msra.mxu0 0.0
    %82 = vmatprep.subr.mxu0 0.0
    %83 = vmatpush1.msra.mxu0 0.0
    %84 = vmatprep.subr.mxu0 0.0
    %85 = vmatpush1.msra.mxu0 0.0
    %86 = vmatprep.subr.mxu0 0.0
    %87 = vmatpush1.msra.mxu0 0.0
    %88 = vmatprep.subr.mxu0 0.0
    %89 = vmatpush1.msra.mxu0 0.0
    %90 = vmatprep.subr.mxu0 0.0
    %91 = vmatpush1.msra.mxu0 0.0
    %92 = vmatprep.subr.mxu0 0.0
    %93 = vmatpush1.msra.mxu0 0.0
    %94 = vmatprep.subr.mxu0 0.0
    %95 = vmatpush1.msra.mxu0 0.0
    %96 = vmatprep.subr.mxu0 0.0
    %97 = vmatpush1.msra.mxu0 0.0
    %98 = vmatprep.subr.mxu0 0.0
    %99 = vmatpush1.msra.mxu0 0.0
    %100 = vmatprep.subr.mxu0 0.0
    %101 = vmatpush1.msra.mxu0 0.0
    %102 = vmatprep.subr.mxu0 0.0
    %103 = vmatpush1.msra.mxu0 0.0
    %104 = vmatprep.subr.mxu0 0.0
    %105 = vmatpush1.msra.mxu0 0.0
    %106 = vmatprep.subr.mxu0 %v28
    %107 = vmatpush1.msra.mxu0 %v27
    %108 = vmatprep.subr.mxu0 %v24
    %109 = vmatpush1.msra.mxu0 %v23
    %110 = vmatprep.subr.mxu0 0.0
    %111 = vmatpush2.msra.mxu0 0.0
    %112 = vmatprep.subr.mxu0 0.0
    %113 = vmatpush2.msra.mxu0 0.0
    %114 = vmatprep.subr.mxu0 0.0
    %115 = vmatpush2.msra.mxu0 0.0
    %116 = vmatprep.subr.mxu0 0.0
    %117 = vmatpush2.msra.mxu0 0.0
    %118 = vmatprep.subr.mxu0 0.0
    %119 = vmatpush2.msra.mxu0 0.0
    %120 = vmatprep.subr.mxu0 0.0
    %121 = vmatpush2.msra.mxu0 0.0
    %122 = vmatprep.subr.mxu0 0.0
    %123 = vmatpush2.msra.mxu0 0.0
    %124 = vmatprep.subr.mxu0 0.0
    %125 = vmatpush2.msra.mxu0 0.0
    %126 = vmatprep.subr.mxu0 0.0
    %127 = vmatpush2.msra.mxu0 0.0
    %128 = vmatprep.subr.mxu0 0.0
    %129 = vmatpush2.msra.mxu0 0.0
    %130 = vmatprep.subr.mxu0 0.0
    %131 = vmatpush2.msra.mxu0 0.0
    %132 = vmatprep.subr.mxu0 0.0
    %133 = vmatpush2.msra.mxu0 0.0
    %134 = vmatprep.subr.mxu0 0.0
    %135 = vmatpush2.msra.mxu0 0.0
    %136 = vmatprep.subr.mxu0 0.0
    %137 = vmatpush2.msra.mxu0 0.0
    %138 = vmatprep.subr.mxu0 0.0
    %139 = vmatpush2.msra.mxu0 0.0
    %140 = vmatprep.subr.mxu0 0.0
    %141 = vmatpush2.msra.mxu0 0.0
    %142 = vmatprep.mubr.f32.mxu0 0.0
    %143 = vmatmul.mubr.f32.gmra.mxu0 %v55
    %v144 = vpop.f32.mrf.mxu0
    %v145 = vadd.f32 %v36, %v144
    %v146 = vpop.f32.mrf.mxu0
    %v147 = vadd.f32 %v40, %v146
    %148 = vmatprep.mubr.f32.mxu0 0.0
    %149 = vmatmul.mubr.f32.gmra.mxu0 %v58
    %v150 = vpop.f32.mrf.mxu0
    %v151 = vadd.f32 %v36, %v150
    %v152 = vpop.f32.mrf.mxu0
    %v153 = vadd.f32 %v40, %v152
    %154 = vmatprep.mubr.f32.mxu0 0.0
    %155 = vmatmul.mubr.f32.gmra.mxu0 %v61
    %v156 = vpop.f32.mrf.mxu0
    %v157 = vadd.f32 %v36, %v156
    %v158 = vpop.f32.mrf.mxu0
    %v159 = vadd.f32 %v40, %v158
    %160 = vmatprep.mubr.f32.mxu0 0.0
    %161 = vmatmul.mubr.f32.gmra.mxu0 %v64
    %v162 = vpop.f32.mrf.mxu0
    %v163 = vadd.f32 %v36, %v162
    %v164 = vpop.f32.mrf.mxu0
    %v165 = vadd.f32 %v40, %v164
    %166 = vmatprep.mubr.f32.mxu0 0.0
    %167 = vmatmul.mubr.f32.gmra.mxu0 %v67
    %v168 = vpop.f32.mrf.mxu0
    %v169 = vadd.f32 %v36, %v168
    %v170 = vpop.f32.mrf.mxu0
    %v171 = vadd.f32 %v40, %v170
    %172 = vmatprep.mubr.f32.mxu0 0.0
    %173 = vmatmul.mubr.f32.gmra.mxu0 %v70
    %v174 = vpop.f32.mrf.mxu0
    %v175 = vadd.f32 %v36, %v174
    %v176 = vpop.f32.mrf.mxu0
    %v177 = vadd.f32 %v40, %v176
    %178 = vmatprep.mubr.f32.mxu0 0.0
    %179 = vmatmul.mubr.f32.gmra.mxu0 %v73
    %v180 = vpop.f32.mrf.mxu0
    %v181 = vadd.f32 %v36, %v180
    %v182 = vpop.f32.mrf.mxu0
    %v183 = vadd.f32 %v40, %v182
    %184 = vmatprep.mubr.f32.mxu0 0.0
    %185 = vmatmul.mubr.f32.gmra.mxu0 %v76
    %v186 = vpop.f32.mrf.mxu0
    %v187 = vadd.f32 %v36, %v186
    %v188 = vpop.f32.mrf.mxu0
    %v189 = vadd.f32 %v40, %v188
    %190 = vdwg.mxu0
    %191 = vmatprep.subr.mxu0 0.0
    %192 = vmatpush1.msra.mxu0 0.0
    %193 = vmatprep.subr.mxu0 0.0
    %194 = vmatpush1.msra.mxu0 0.0
    %195 = vmatprep.subr.mxu0 0.0
    %196 = vmatpush1.msra.mxu0 0.0
    %197 = vmatprep.subr.mxu0 0.0
    %198 = vmatpush1.msra.mxu0 0.0
    %199 = vmatprep.subr.mxu0 0.0
    %200 = vmatpush1.msra.mxu0 0.0
    %201 = vmatprep.subr.mxu0 0.0
    %202 = vmatpush1.msra.mxu0 0.0
    %203 = vmatprep.subr.mxu0 0.0
    %204 = vmatpush1.msra.mxu0 0.0
    %205 = vmatprep.subr.mxu0 0.0
    %206 = vmatpush1.msra.mxu0 0.0
    %207 = vmatprep.subr.mxu0 0.0
    %208 = vmatpush1.msra.mxu0 0.0
    %209 = vmatprep.subr.mxu0 0.0
    %210 = vmatpush1.msra.mxu0 0.0
    %211 = vmatprep.subr.mxu0 0.0
    %212 = vmatpush1.msra.mxu0 0.0
    %213 = vmatprep.subr.mxu0 0.0
    %214 = vmatpush1.msra.mxu0 0.0
    %215 = vmatprep.subr.mxu0 0.0
    %216 = vmatpush1.msra.mxu0 0.0
    %217 = vmatprep.subr.mxu0 0.0
    %218 = vmatpush1.msra.mxu0 0.0
    %219 = vmatprep.subr.mxu0 %v30
    %220 = vmatpush1.msra.mxu0 %v29
    %221 = vmatprep.subr.mxu0 %v26
    %222 = vmatpush1.msra.mxu0 %v25
    %223 = vmatprep.subr.mxu0 0.0
    %224 = vmatpush2.msra.mxu0 0.0
    %225 = vmatprep.subr.mxu0 0.0
    %226 = vmatpush2.msra.mxu0 0.0
    %227 = vmatprep.subr.mxu0 0.0
    %228 = vmatpush2.msra.mxu0 0.0
    %229 = vmatprep.subr.mxu0 0.0
    %230 = vmatpush2.msra.mxu0 0.0
    %231 = vmatprep.subr.mxu0 0.0
    %232 = vmatpush2.msra.mxu0 0.0
    %233 = vmatprep.subr.mxu0 0.0
    %234 = vmatpush2.msra.mxu0 0.0
    %235 = vmatprep.subr.mxu0 0.0
    %236 = vmatpush2.msra.mxu0 0.0
    %237 = vmatprep.subr.mxu0 0.0
    %238 = vmatpush2.msra.mxu0 0.0
    %239 = vmatprep.subr.mxu0 0.0
    %240 = vmatpush2.msra.mxu0 0.0
    %241 = vmatprep.subr.mxu0 0.0
    %242 = vmatpush2.msra.mxu0 0.0
    %243 = vmatprep.subr.mxu0 0.0
    %244 = vmatpush2.msra.mxu0 0.0
    %245 = vmatprep.subr.mxu0 0.0
    %246 = vmatpush2.msra.mxu0 0.0
    %247 = vmatprep.subr.mxu0 0.0
    %248 = vmatpush2.msra.mxu0 0.0
    %249 = vmatprep.subr.mxu0 0.0
    %250 = vmatpush2.msra.mxu0 0.0
    %251 = vmatprep.subr.mxu0 0.0
    %252 = vmatpush2.msra.mxu0 0.0
    %253 = vmatprep.subr.mxu0 0.0
    %254 = vmatpush2.msra.mxu0 0.0
    %255 = vmatprep.mubr.f32.mxu0 0.0
    %256 = vmatmul.mubr.f32.gmra.mxu0 %v55
    %v257 = vpop.f32.mrf.mxu0
    %v258 = vadd.f32 %v44, %v257
    %v259 = vpop.f32.mrf.mxu0
    %v260 = vadd.f32 %v48, %v259
    %261 = vmatprep.mubr.f32.mxu0 0.0
    %262 = vmatmul.mubr.f32.gmra.mxu0 %v58
    %v263 = vpop.f32.mrf.mxu0
    %v264 = vadd.f32 %v44, %v263
    %v265 = vpop.f32.mrf.mxu0
    %v266 = vadd.f32 %v48, %v265
    %267 = vmatprep.mubr.f32.mxu0 0.0
    %268 = vmatmul.mubr.f32.gmra.mxu0 %v61
    %v269 = vpop.f32.mrf.mxu0
    %v270 = vadd.f32 %v44, %v269
    %v271 = vpop.f32.mrf.mxu0
    %v272 = vadd.f32 %v48, %v271
    %273 = vmatprep.mubr.f32.mxu0 0.0
    %274 = vmatmul.mubr.f32.gmra.mxu0 %v64
    %v275 = vpop.f32.mrf.mxu0
    %v276 = vadd.f32 %v44, %v275
    %v277 = vpop.f32.mrf.mxu0
    %v278 = vadd.f32 %v48, %v277
    %279 = vmatprep.mubr.f32.mxu0 0.0
    %280 = vmatmul.mubr.f32.gmra.mxu0 %v67
    %v281 = vpop.f32.mrf.mxu0
    %v282 = vadd.f32 %v44, %v281
    %v283 = vpop.f32.mrf.mxu0
    %v284 = vadd.f32 %v48, %v283
    %285 = vmatprep.mubr.f32.mxu0 0.0
    %286 = vmatmul.mubr.f32.gmra.mxu0 %v70
    %v287 = vpop.f32.mrf.mxu0
    %v288 = vadd.f32 %v44, %v287
    %v289 = vpop.f32.mrf.mxu0
    %v290 = vadd.f32 %v48, %v289
    %291 = vmatprep.mubr.f32.mxu0 0.0
    %292 = vmatmul.mubr.f32.gmra.mxu0 %v73
    %v293 = vpop.f32.mrf.mxu0
    %v294 = vadd.f32 %v44, %v293
    %v295 = vpop.f32.mrf.mxu0
    %v296 = vadd.f32 %v48, %v295
    %297 = vmatprep.mubr.f32.mxu0 0.0
    %298 = vmatmul.mubr.f32.gmra.mxu0 %v76
    %v299 = vpop.f32.mrf.mxu0
    %v300 = vadd.f32 %v44, %v299
    %v301 = vpop.f32.mrf.mxu0
    %v302 = vadd.f32 %v48, %v301
    %303 = vdwg.mxu0
    %304 = vst [vmem:[#allocation2] sm:$0xff] %v145
    %305 = vst [vmem:[#allocation2 + $0x8] sm:$0xff] %v147
    %306 = vst [vmem:[#allocation2 + $0x10] sm:$0xff] %v258
    %307 = vst [vmem:[#allocation2 + $0x18] sm:$0xff] %v260
    %308 = vst [vmem:[#allocation2 + $0x20] sm:$0xff] %v151
    %309 = vst [vmem:[#allocation2 + $0x28] sm:$0xff] %v153
    %310 = vst [vmem:[#allocation2 + $0x30] sm:$0xff] %v264
    %311 = vst [vmem:[#allocation2 + $0x38] sm:$0xff] %v266
    %312 = vst [vmem:[#allocation2 + $0x40] sm:$0xff] %v157
    %313 = vst [vmem:[#allocation2 + $0x48] sm:$0xff] %v159
    %314 = vst [vmem:[#allocation2 + $0x50] sm:$0xff] %v270
    %315 = vst [vmem:[#allocation2 + $0x58] sm:$0xff] %v272
    %316 = vst [vmem:[#allocation2 + $0x60] sm:$0xff] %v163
    %317 = vst [vmem:[#allocation2 + $0x68] sm:$0xff] %v165
    %318 = vst [vmem:[#allocation2 + $0x70] sm:$0xff] %v276
    %319 = vst [vmem:[#allocation2 + $0x78] sm:$0xff] %v278
    %320 = vst [vmem:[#allocation2 + $0x80] sm:$0xff] %v169
    %321 = vst [vmem:[#allocation2 + $0x88] sm:$0xff] %v171
    %322 = vst [vmem:[#allocation2 + $0x90] sm:$0xff] %v282
    %323 = vst [vmem:[#allocation2 + $0x98] sm:$0xff] %v284
    %324 = vst [vmem:[#allocation2 + $0xa0] sm:$0xff] %v175
    %325 = vst [vmem:[#allocation2 + $0xa8] sm:$0xff] %v177
    %326 = vst [vmem:[#allocation2 + $0xb0] sm:$0xff] %v288
    %327 = vst [vmem:[#allocation2 + $0xb8] sm:$0xff] %v290
    %328 = vst [vmem:[#allocation2 + $0xc0] sm:$0xff] %v181
    %329 = vst [vmem:[#allocation2 + $0xc8] sm:$0xff] %v183
    %330 = vst [vmem:[#allocation2 + $0xd0] sm:$0xff] %v294
    %331 = vst [vmem:[#allocation2 + $0xd8] sm:$0xff] %v296
    %332 = vst [vmem:[#allocation2 + $0xe0] sm:$0xff] %v187
    %333 = vst [vmem:[#allocation2 + $0xe8] sm:$0xff] %v189
    %334 = vst [vmem:[#allocation2 + $0xf0] sm:$0xff] %v300
    %335 = vst [vmem:[#allocation2 + $0xf8] sm:$0xff] %v302
    // Predicated region
    $region14: #{tpu_custom_call.1} parent=1 // pred_check
      _
    $region15: #{tpu_custom_call.1} parent=1 // pred_check_branch
      %337 = sbr.rel (0) target = $region17
    $region16: #{tpu_custom_call.1} parent=1 // pred_region
      %s339 = ssub.s32 4096, 4096
      %340 = vsyncadd [#allocation3], %s339
      %s341 = sshll.u32 [#allocation2], 4
      %s342 = int_to_ptr.vmem [resolvable:$true] %s341
      %347 = dma.vmem_to_hbm [thread:$0]  %s342, 4096, %s3, [#allocation3], 512, 512, 32
    $region17: #{tpu_custom_call.1} parent=1 // pred_fallthru
      _
    // Predicated region
    $region18: #{tpu_custom_call.1} parent=1 // pred_check
      _
    $region19: #{tpu_custom_call.1} parent=1 // pred_check_branch
      %349 = sbr.rel (0) target = $region21
    $region20: #{tpu_custom_call.1} parent=1 // pred_region
      %350 = dma.done [#allocation3], 4096
    $region21: #{tpu_custom_call.1} parent=1 // pred_fallthru
      _
    %351 = vsyncpa [#allocation3], 1

</llo_original>
